<compile_context>
chip_gen: v7x
topology: tpu7x:2x2x1
jax: 0.10.0
libtpu: 0.0.40
codegen_flags: <defaults>
</compile_context>

<pallas_src>
import functools

import jax
import jax.numpy as jnp
from jax.experimental import pallas as pl
from jax.experimental.pallas import tpu as pltpu


# ---------------------------------------------------------------------------
# Kernel: one (batch, row-tile) grid step computes
#   outT[c, n] = sum_k xwT[c,k]*W[n,k] + sum_k ywT[c,k]*P[n,k] + bias[c]
# classes on sublanes (Cp = round_up(C, 8)), rows lane-dense.
# ---------------------------------------------------------------------------
_NT = (((1,), (1,)), ((), ()))  # contract last dim of both operands (A @ B^T)


def _fused_gmul_linear_kernel(w_ref, xwt_ref, p_ref, ywt_ref, b_ref, out_ref):
    # w_ref   : (TN, N*J)    flattened graph-operator rows
    # xwt_ref : (Cp, N*J)    (x folded with wx)^T, classes on sublanes
    # p_ref   : (TN, M*Jp)   flattened line-graph projector rows
    # ywt_ref : (Cp, M*Jp)   (y folded with wy)^T
    # b_ref   : (Cp, 1)      pre-summed bias, f32
    # out_ref : (Cp, TN)     transposed output block, f32, lane-dense
    acc = jax.lax.dot_general(xwt_ref[...], w_ref[...], _NT,
                              preferred_element_type=jnp.float32)
    acc = acc + jax.lax.dot_general(ywt_ref[...], p_ref[...], _NT,
                                    preferred_element_type=jnp.float32)
    out_ref[...] = (acc + b_ref[...]).astype(out_ref.dtype)


# ---------------------------------------------------------------------------
# Static (trace-time) helpers: VMEM budget + row-tile selection
# ---------------------------------------------------------------------------
def _round_up(v, m):
    return ((v + m - 1) // m) * m


def _vmem_tile_bytes(rows, cols, itemsize):
    # (8,128)-native-tile aware VMEM footprint of a 2-D block.
    sub = max(1, 32 // itemsize)
    return _round_up(max(rows, 1), sub) * _round_up(max(cols, 1), 128) * itemsize


def _vmem_budget():
    cap = 64 * 1024 * 1024                       # conservative default (v7x)
    try:
        cap = int(getattr(pltpu.get_tpu_info(), "vmem_capacity_bytes", cap))
    except Exception:
        pass
    tile_budget = (cap * 7) // 16                # ~56 MiB v5e/v6e, ~28 MiB v7x
    vmem_limit = int(min((cap * 3) // 4, 112 * 1024 * 1024))
    return tile_budget, vmem_limit


def _block_bytes(tn, nj, mjp, cp, itemsize):
    # Double-buffered VMEM footprint of one grid step.
    return 2 * (_vmem_tile_bytes(tn, nj, itemsize)
                + _vmem_tile_bytes(tn, mjp, itemsize)
                + _vmem_tile_bytes(cp, nj, itemsize)
                + _vmem_tile_bytes(cp, mjp, itemsize)
                + _vmem_tile_bytes(cp, 1, 4)
                + _vmem_tile_bytes(cp, tn, 4))


def _pick_row_tile(n, b, nj, mjp, cp, itemsize, budget):
    # Output lanes carry rows -> TN must be a multiple of 128 or the full N.
    cands = []
    if n <= 1024:
        cands.append(n)
    cands += [t for t in (1024, 512, 384, 256, 128) if t < n]
    fitting = [t for t in cands if _block_bytes(t, nj, mjp, cp, itemsize) <= budget]
    if not fitting:
        # TODO(synk): add a K-reduction grid axis ("arbitrary", f32 VMEM
        # accumulator, pl.when init/flush) for graphs where even a 128-row
        # W/P block plus the folded operands exceed the VMEM budget.
        return min(n, 128)
    # Prefer configurations with >= 4 total grid steps (>= 2 per v7x core).
    preferred = [t for t in fitting if b * (-(-n // t)) >= 4]
    return max(preferred) if preferred else max(fitting)


# ---------------------------------------------------------------------------
# Forward wrapper (mirrors gnn_atomic_lg_final.forward; returns (W, x_output))
# ---------------------------------------------------------------------------
@functools.partial(jax.jit, static_argnames=("compute_dtype",))
def gnn_atomic_lg_final_forward(W, x, W_lg, y, P, params, compute_dtype=None):
    del W_lg  # unused in the reference forward pass
    wx, bx, wy, by = params          # wx: (J*F0, C), wy: (Jp*F1, C), biases (1, C)

    B, N, _, J = W.shape
    _, _, M, Jp = P.shape
    F0 = x.shape[-1]
    F1 = y.shape[-1]
    C = wx.shape[-1]
    NJ = N * J
    MJp = M * Jp

    cdt = jnp.dtype(W.dtype) if compute_dtype is None else jnp.dtype(compute_dtype)
    itemsize = cdt.itemsize

    # Classes live on sublanes -> pad only to the f32 sublane quantum (8).
    Cp = _round_up(C, 8)

    # 1) Free row-major reshapes: merge the trailing operator axis into the
    #    contraction dim (column m*J + j of W_flat is W[:, :, m, j]).
    W_flat = W.reshape(B, N, NJ).astype(cdt)
    P_flat = P.reshape(B, N, MJp).astype(cdt)

    # 2) Fold the tiny Linear weights into x / y once, transposed so classes
    #    sit on sublanes:  xwT[b, c, m*J+j] = sum_f x[b,m,f] * wx[j*F0+f, c].
    wx_r = wx.astype(jnp.float32).reshape(J, F0, C)
    wy_r = wy.astype(jnp.float32).reshape(Jp, F1, C)
    xwT = jnp.einsum('bmf,jfc->bcmj', x.astype(jnp.float32), wx_r,
                     preferred_element_type=jnp.float32).reshape(B, C, NJ)
    ywT = jnp.einsum('bmf,jfc->bcmj', y.astype(jnp.float32), wy_r,
                     preferred_element_type=jnp.float32).reshape(B, C, MJp)
    bias = (bx + by).astype(jnp.float32).reshape(C, 1)
    if Cp != C:
        xwT = jnp.pad(xwT, ((0, 0), (0, Cp - C), (0, 0)))
        ywT = jnp.pad(ywT, ((0, 0), (0, Cp - C), (0, 0)))
        bias = jnp.pad(bias, ((0, Cp - C), (0, 0)))
    xwT = xwT.astype(cdt)
    ywT = ywT.astype(cdt)

    # 3) Generation-aware tiling (TB fixed to 1, batch dim squeezed).
    budget, vmem_limit = _vmem_budget()
    TN = _pick_row_tile(N, B, NJ, MJp, Cp, itemsize, budget)
    grid = (B, pl.cdiv(N, TN))
    # Default double-buffering; a Buffered(3) sweep on W_flat/P_flat is only
    # worthwhile if a profile shows exposed DMA between grid steps.

    flops = 2 * B * N * (NJ + MJp) * Cp
    bytes_accessed = ((W_flat.size + P_flat.size + xwT.size + ywT.size) * itemsize
                      + (B * Cp * N + Cp) * 4)

    out_t = pl.pallas_call(
        _fused_gmul_linear_kernel,
        out_shape=jax.ShapeDtypeStruct((B, Cp, N), jnp.float32),
        grid=grid,
        in_specs=[
            pl.BlockSpec((pl.Squeezed(), TN, NJ), lambda b, r: (b, r, 0)),
            pl.BlockSpec((pl.Squeezed(), Cp, NJ), lambda b, r: (b, 0, 0)),
            pl.BlockSpec((pl.Squeezed(), TN, MJp), lambda b, r: (b, r, 0)),
            pl.BlockSpec((pl.Squeezed(), Cp, MJp), lambda b, r: (b, 0, 0)),
            pl.BlockSpec((Cp, 1), lambda b, r: (0, 0)),
        ],
        out_specs=pl.BlockSpec((pl.Squeezed(), Cp, TN), lambda b, r: (b, 0, r)),
        compiler_params=pltpu.CompilerParams(
            dimension_semantics=("parallel", "parallel"),
            vmem_limit_bytes=vmem_limit),
        cost_estimate=pl.CostEstimate(
            flops=flops, transcendentals=0, bytes_accessed=bytes_accessed),
    )(W_flat, xwT, P_flat, ywT, bias)

    # Tiny (B, Cp, N) -> (B, N, C) transpose on the small output buffer.
    x_output = jnp.transpose(out_t, (0, 2, 1))
    if Cp != C:
        x_output = x_output[..., :C]
    return W, x_output


# ---------------------------------------------------------------------------
# Pure-JAX reference (correctness check only)
# ---------------------------------------------------------------------------
def _gmul_ref(Wt, xt):
    out = jnp.einsum('bmnj,bnf->bmjf', Wt, xt)
    Bb, Nn, Jj, Ff = out.shape
    return out.reshape(Bb, Nn, Jj * Ff)


def _reference_forward(W, x, y, P, params):
    wx, bx, wy, by = params
    x2x = _gmul_ref(W, x)             # (B, N, J*F0)
    y2x = _gmul_ref(P, y)             # (B, N, Jp*F1)
    return (jnp.einsum('bnk,kc->bnc', x2x, wx)
            + jnp.einsum('bnk,kc->bnc', y2x, wy)
            + bx[None] + by[None])


if __name__ == "__main__":
    # Shapes consistent with the module:
    #   feature_maps = (F0, F1) = (4, 6), J = 2, n_classes = 8
    #   B = 2 graphs, N = 16 nodes, M = 24 line-graph nodes (edges)
    B, N, M = 2, 16, 24
    J, Jp = 2, 2
    F0, F1 = 4, 6
    C = 8                              # n_classes
    num_inputs = J * F0
    num_inputs_2 = Jp * F1

    key = jax.random.PRNGKey(0)
    kW, kx, kWlg, ky, kP, kwx, kbx, kwy, kby = jax.random.split(key, 9)

    W = jax.random.normal(kW, (B, N, N, J), dtype=jnp.float32)
    x = jax.random.normal(kx, (B, N, F0), dtype=jnp.float32)
    W_lg = jax.random.normal(kWlg, (B, M, M, J), dtype=jnp.float32)  # unused
    y = jax.random.normal(ky, (B, M, F1), dtype=jnp.float32)
    P = jax.random.normal(kP, (B, N, M, Jp), dtype=jnp.float32)

    # PyTorch-style Linear params, stored pre-transposed as (in, out).
    bound_x = 1.0 / (num_inputs ** 0.5)
    bound_y = 1.0 / (num_inputs_2 ** 0.5)
    wx = jax.random.uniform(kwx, (num_inputs, C), jnp.float32, -bound_x, bound_x)
    bx = jax.random.uniform(kbx, (1, C), jnp.float32, -bound_x, bound_x)
    wy = jax.random.uniform(kwy, (num_inputs_2, C), jnp.float32, -bound_y, bound_y)
    by = jax.random.uniform(kby, (1, C), jnp.float32, -bound_y, bound_y)
    params = (wx, bx, wy, by)

    W_out, x_output = gnn_atomic_lg_final_forward(W, x, W_lg, y, P, params)
    x_output = jax.block_until_ready(x_output)

    ref = _reference_forward(W, x, y, P, params)
    assert x_output.shape == (B, N, C)
    max_err = jnp.max(jnp.abs(x_output - ref))
    assert jnp.allclose(x_output, ref, atol=1e-3, rtol=1e-3), \
        f"max err {max_err}"

    print("KERNEL_OK")
</pallas_src>

<mosaic_0001>
module attributes {stable_mosaic.version = 11 : i64} {
  func.func @_fused_gmul_linear_kernel(%arg0: i32, %arg1: i32, %arg2: memref<1x16x32xf32, #tpu.memory_space<vmem>>, %arg3: memref<1x8x32xf32, #tpu.memory_space<vmem>>, %arg4: memref<1x16x48xf32, #tpu.memory_space<vmem>>, %arg5: memref<1x8x48xf32, #tpu.memory_space<vmem>>, %arg6: memref<8x1xf32, #tpu.memory_space<vmem>>, %arg7: memref<1x8x16xf32, #tpu.memory_space<vmem>>) attributes {dimension_semantics = [#tpu.dimension_semantics<parallel>, #tpu.dimension_semantics<parallel>], iteration_bounds = array<i64: 2, 1>, scalar_prefetch = 0 : i64, scratch_operands = 0 : i64, tpu.core_type = #tpu.core_type<tc>, window_params = [{transform_indices = @transform_0, window_bounds = array<i64: 1, 16, 32>}, {transform_indices = @transform_1, window_bounds = array<i64: 1, 8, 32>}, {transform_indices = @transform_2, window_bounds = array<i64: 1, 16, 48>}, {transform_indices = @transform_3, window_bounds = array<i64: 1, 8, 48>}, {pipeline_mode = #tpu.pipeline_mode<synchronous>, transform_indices = @transform_4, window_bounds = array<i64: 8, 1>}, {transform_indices = @transform_5, window_bounds = array<i64: 1, 8, 16>}]} {
    %c0 = arith.constant 0 : index
    %c0_0 = arith.constant 0 : index
    %c0_1 = arith.constant 0 : index
    %0 = vector.load %arg3[%c0, %c0_0, %c0_1] : memref<1x8x32xf32, #tpu.memory_space<vmem>>, vector<1x8x32xf32>
    %1 = vector.shape_cast %0 : vector<1x8x32xf32> to vector<8x32xf32>
    %c0_2 = arith.constant 0 : index
    %c0_3 = arith.constant 0 : index
    %c0_4 = arith.constant 0 : index
    %2 = vector.load %arg2[%c0_2, %c0_3, %c0_4] : memref<1x16x32xf32, #tpu.memory_space<vmem>>, vector<1x16x32xf32>
    %3 = vector.shape_cast %2 : vector<1x16x32xf32> to vector<16x32xf32>
    %cst = arith.constant dense<0.000000e+00> : vector<8x16xf32>
    %4 = tpu.matmul %1, %3, %cst {dimension_numbers = #tpu.dot_dimension_numbers<[1], [1], [0], [0], [0, 0, 1, 0], [], []>} : vector<8x32xf32>, vector<16x32xf32>, vector<8x16xf32> -> vector<8x16xf32>
    %c0_5 = arith.constant 0 : index
    %c0_6 = arith.constant 0 : index
    %c0_7 = arith.constant 0 : index
    %5 = vector.load %arg5[%c0_5, %c0_6, %c0_7] : memref<1x8x48xf32, #tpu.memory_space<vmem>>, vector<1x8x48xf32>
    %6 = vector.shape_cast %5 : vector<1x8x48xf32> to vector<8x48xf32>
    %c0_8 = arith.constant 0 : index
    %c0_9 = arith.constant 0 : index
    %c0_10 = arith.constant 0 : index
    %7 = vector.load %arg4[%c0_8, %c0_9, %c0_10] : memref<1x16x48xf32, #tpu.memory_space<vmem>>, vector<1x16x48xf32>
    %8 = vector.shape_cast %7 : vector<1x16x48xf32> to vector<16x48xf32>
    %cst_11 = arith.constant dense<0.000000e+00> : vector<8x16xf32>
    %9 = tpu.matmul %6, %8, %cst_11 {dimension_numbers = #tpu.dot_dimension_numbers<[1], [1], [0], [0], [0, 0, 1, 0], [], []>} : vector<8x48xf32>, vector<16x48xf32>, vector<8x16xf32> -> vector<8x16xf32>
    %10 = arith.addf %4, %9 : vector<8x16xf32>
    %c0_12 = arith.constant 0 : index
    %c0_13 = arith.constant 0 : index
    %11 = vector.load %arg6[%c0_12, %c0_13] : memref<8x1xf32, #tpu.memory_space<vmem>>, vector<8x1xf32>
    %12 = vector.broadcast %11 : vector<8x1xf32> to vector<8x16xf32>
    %13 = arith.addf %10, %12 : vector<8x16xf32>
    %c0_14 = arith.constant 0 : index
    %c0_15 = arith.constant 0 : index
    %c0_16 = arith.constant 0 : index
    %14 = vector.load %arg7[%c0_14, %c0_15, %c0_16] : memref<1x8x16xf32, #tpu.memory_space<vmem>>, vector<1x8x16xf32>
    %15 = vector.shape_cast %14 : vector<1x8x16xf32> to vector<8x16xf32>
    %16 = vector.shape_cast %13 : vector<8x16xf32> to vector<1x8x16xf32>
    tpu.vector_store %arg7[%c0_14, %c0_15, %c0_16], %16 {strides = array<i32>} : memref<1x8x16xf32, #tpu.memory_space<vmem>>, vector<1x8x16xf32>,
    return
  }
  func.func @transform_0(%arg0: i32, %arg1: i32) -> (i32, i32, i32) {
    %c0_i32 = arith.constant 0 : i32
    %c0_i32_0 = arith.constant 0 : i32
    return %arg0, %arg1, %c0_i32 : i32, i32, i32
  }
  func.func @transform_1(%arg0: i32, %arg1: i32) -> (i32, i32, i32) {
    %c0_i32 = arith.constant 0 : i32
    %c0_i32_0 = arith.constant 0 : i32
    %c0_i32_1 = arith.constant 0 : i32
    return %arg0, %c0_i32, %c0_i32_0 : i32, i32, i32
  }
  func.func @transform_2(%arg0: i32, %arg1: i32) -> (i32, i32, i32) {
    %c0_i32 = arith.constant 0 : i32
    %c0_i32_0 = arith.constant 0 : i32
    return %arg0, %arg1, %c0_i32 : i32, i32, i32
  }
  func.func @transform_3(%arg0: i32, %arg1: i32) -> (i32, i32, i32) {
    %c0_i32 = arith.constant 0 : i32
    %c0_i32_0 = arith.constant 0 : i32
    %c0_i32_1 = arith.constant 0 : i32
    return %arg0, %c0_i32, %c0_i32_0 : i32, i32, i32
  }
  func.func @transform_4(%arg0: i32, %arg1: i32) -> (i32, i32) {
    %c0_i32 = arith.constant 0 : i32
    %c0_i32_0 = arith.constant 0 : i32
    %c0_i32_1 = arith.constant 0 : i32
    return %c0_i32, %c0_i32_0 : i32, i32
  }
  func.func @transform_5(%arg0: i32, %arg1: i32) -> (i32, i32, i32) {
    %c0_i32 = arith.constant 0 : i32
    %c0_i32_0 = arith.constant 0 : i32
    return %arg0, %c0_i32, %arg1 : i32, i32, i32
  }
}

</mosaic_0001>

<llo_original>
// kernel: gnn_atomic_lg_final_forward.1
$region0: #{gnn_atomic_lg_final_forward.1}
  #allocation0 [shape = 'u32[]', space=smem, size = 0x4, offset = 0x4, fixed_abs, tag = 'smem constant byte address 0x4 - core index']
  #allocation1 [shape = 'u32[144,128]{1,0:T(1,128)}', space=vmem, size = 0x12000, scoped, tag = 'internal scratch']
  %s0 = inlined_call_operand.vmem [shape: f32[2,16,32], index: 0, kind: input, shape index: {}]
  %s1 = inlined_call_operand.vmem [shape: f32[2,8,32], index: 1, kind: input, shape index: {}]
  %s2 = inlined_call_operand.vmem [shape: f32[2,16,48], index: 2, kind: input, shape index: {}]
  %s3 = inlined_call_operand.vmem [shape: f32[2,8,48], index: 3, kind: input, shape index: {}]
  %s4 = inlined_call_operand.vmem [shape: f32[8,1], index: 4, kind: input, shape index: {}]
  %s5 = inlined_call_operand.hbm [shape: f32[2,8,16], index: 5, kind: output, shape index: {}]
  %s6 = sld [smem:[#allocation0]]
  $region53: #{gnn_atomic_lg_final_forward.1} parent=0
    _
  %s8 = ssub.s32 1, %s6
  %s9 = scalar_select 0, %s8, %s6
  $region1: #{gnn_atomic_lg_final_forward.1} parent=0
    #allocation2 [shape = 'u8[8192]{0}', space=vmem, size = 0x2000, scoped, tag = 'output window, operand 0']
    #allocation3 [shape = 's32[2]{0}', space=sflag, size = 0x8, scoped, tag = 'scoped memory for gnn_atomic_lg_final_forward.1']
    %10 = vsyncpa [#allocation3], 0
    %s11 = scalar_lea.sflag [#allocation3], 1
    %12 = vsyncpa %s11, 0
    loop: start=0, step=1, limit=4
    $region2: #{gnn_atomic_lg_final_forward.1} parent=1 // loop_pre_header
      _
    $region3: #{gnn_atomic_lg_final_forward.1} parent=1 // loop_header
      %s14 = sphi 0, %s18
      %p15 = scmp.ge.s32.totalorder %s14, 4
      %s21 = sphi 0, %s33
      %s22 = sphi 0, %s29
      %s23 = sphi 0, %s21
      %s24 = sphi 0, %s22
      %s25 = sphi 0, %s23
      %s26 = sphi 0, %s24
      %s38 = sphi 0, %s40
      %s41 = sphi 0, %s38
      %s42 = sphi 0, %s41
      %s58 = sphi 0, %s42
      %s64 = sphi 0, %s66
      %s67 = sphi 0, %s64
      %s68 = sphi 0, %s67
      %s84 = sphi 0, %s68
      %s92 = sphi 0, %s94
      %s95 = sphi 0, %s92
      %s96 = sphi 0, %s95
      %s112 = sphi 0, %s96
      %s118 = sphi 0, %s120
      %s121 = sphi 0, %s118
      %s122 = sphi 0, %s121
      %s138 = sphi 0, %s122
      %s142 = sphi 0, %s142
      %s144 = sphi 0, %s142
      %s145 = sphi 0, %s144
      %s159 = sphi 0, %s145
      %s167 = sphi 0, %s169
      %s170 = sphi 0, %s167
      %s171 = sphi 0, %s170
      %s187 = sphi 0, %s171
    $region4: #{gnn_atomic_lg_final_forward.1} parent=1 // loop_header_branch
      %17 = sbr.rel (%p15) target = $region8
    $region5: #{gnn_atomic_lg_final_forward.1} parent=1 // loop_body
      %s19 = ssub.s32 %s14, 1
      %s20 = ssub.s32 %s14, 2
      %s27 = sadd.s32 1, %s22
      %p28 = scmp.ge.s32.totalorder %s27, 1
      %s29 = scalar_select %p28, 0, %s27
      %s30 = sadd.s32 1, %s21
      %s31 = scalar_select %p28, %s30, %s21
      %p32 = scmp.ge.s32.totalorder %s31, 2
      %s33 = scalar_select %p32, 0, %s31
      %s34 = ssub.s32 %s21, %s33
      %s35 = ssub.s32 %s22, %s29
      %s36 = sor.u32 %s34, %s35
      %p37 = scmp.eq.s32.totalorder %s36, 0
      %s39 = sadd.s32 %s38, 1
      %s40 = scalar_select %p37, %s38, %s39
      %p43 = pneg %p37
      %p44 = scmp.eq.s32.totalorder %s14, 1
      %p45 = por %p43, %p44
      %p46 = scmp.ne.s32.totalorder %s38, %s41
      %p47 = scmp.eq.s32.totalorder %s14, 0
      %p48 = por %p46, %p47
      %p49 = scmp.ne.s32.totalorder %s38, %s41
      %p50 = scmp.eq.s32.totalorder %s19, 1
      %p51 = por %p49, %p50
      %p52 = scmp.ne.s32.totalorder %s41, %s42
      %p53 = scmp.eq.s32.totalorder %s19, 0
      %p54 = por %p52, %p53
      %p55 = scmp.ne.s32.totalorder %s41, %s42
      %p56 = scmp.eq.s32.totalorder %s20, 1
      %p57 = por %p55, %p56
      %p59 = scmp.ne.s32.totalorder %s42, %s58
      %p60 = scmp.eq.s32.totalorder %s20, 0
      %p61 = por %p59, %p60
      %s62 = ssub.s32 %s21, %s33
      %p63 = scmp.eq.s32.totalorder %s62, 0
      %s65 = sadd.s32 %s64, 1
      %s66 = scalar_select %p63, %s64, %s65
      %p69 = pneg %p63
      %p70 = scmp.eq.s32.totalorder %s14, 1
      %p71 = por %p69, %p70
      %p72 = scmp.ne.s32.totalorder %s64, %s67
      %p73 = scmp.eq.s32.totalorder %s14, 0
      %p74 = por %p72, %p73
      %p75 = scmp.ne.s32.totalorder %s64, %s67
      %p76 = scmp.eq.s32.totalorder %s19, 1
      %p77 = por %p75, %p76
      %p78 = scmp.ne.s32.totalorder %s67, %s68
      %p79 = scmp.eq.s32.totalorder %s19, 0
      %p80 = por %p78, %p79
      %p81 = scmp.ne.s32.totalorder %s67, %s68
      %p82 = scmp.eq.s32.totalorder %s20, 1
      %p83 = por %p81, %p82
      %p85 = scmp.ne.s32.totalorder %s68, %s84
      %p86 = scmp.eq.s32.totalorder %s20, 0
      %p87 = por %p85, %p86
      %s88 = ssub.s32 %s21, %s33
      %s89 = ssub.s32 %s22, %s29
      %s90 = sor.u32 %s88, %s89
      %p91 = scmp.eq.s32.totalorder %s90, 0
      %s93 = sadd.s32 %s92, 1
      %s94 = scalar_select %p91, %s92, %s93
      %p97 = pneg %p91
      %p98 = scmp.eq.s32.totalorder %s14, 1
      %p99 = por %p97, %p98
      %p100 = scmp.ne.s32.totalorder %s92, %s95
      %p101 = scmp.eq.s32.totalorder %s14, 0
      %p102 = por %p100, %p101
      %p103 = scmp.ne.s32.totalorder %s92, %s95
      %p104 = scmp.eq.s32.totalorder %s19, 1
      %p105 = por %p103, %p104
      %p106 = scmp.ne.s32.totalorder %s95, %s96
      %p107 = scmp.eq.s32.totalorder %s19, 0
      %p108 = por %p106, %p107
      %p109 = scmp.ne.s32.totalorder %s95, %s96
      %p110 = scmp.eq.s32.totalorder %s20, 1
      %p111 = por %p109, %p110
      %p113 = scmp.ne.s32.totalorder %s96, %s112
      %p114 = scmp.eq.s32.totalorder %s20, 0
      %p115 = por %p113, %p114
      %s116 = ssub.s32 %s21, %s33
      %p117 = scmp.eq.s32.totalorder %s116, 0
      %s119 = sadd.s32 %s118, 1
      %s120 = scalar_select %p117, %s118, %s119
      %p123 = pneg %p117
      %p124 = scmp.eq.s32.totalorder %s14, 1
      %p125 = por %p123, %p124
      %p126 = scmp.ne.s32.totalorder %s118, %s121
      %p127 = scmp.eq.s32.totalorder %s14, 0
      %p128 = por %p126, %p127
      %p129 = scmp.ne.s32.totalorder %s118, %s121
      %p130 = scmp.eq.s32.totalorder %s19, 1
      %p131 = por %p129, %p130
      %p132 = scmp.ne.s32.totalorder %s121, %s122
      %p133 = scmp.eq.s32.totalorder %s19, 0
      %p134 = por %p132, %p133
      %p135 = scmp.ne.s32.totalorder %s121, %s122
      %p136 = scmp.eq.s32.totalorder %s20, 1
      %p137 = por %p135, %p136
      %p139 = scmp.ne.s32.totalorder %s122, %s138
      %p140 = scmp.eq.s32.totalorder %s20, 0
      %p141 = por %p139, %p140
      %s143 = sadd.s32 %s142, 1
      %p146 = scmp.eq.s32.totalorder %s14, 1
      %p147 = scmp.ne.s32.totalorder %s142, %s144
      %p148 = scmp.eq.s32.totalorder %s14, 0
      %p149 = por %p147, %p148
      %p150 = scmp.ne.s32.totalorder %s142, %s144
      %p151 = scmp.eq.s32.totalorder %s19, 1
      %p152 = por %p150, %p151
      %p153 = scmp.ne.s32.totalorder %s144, %s145
      %p154 = scmp.eq.s32.totalorder %s19, 0
      %p155 = por %p153, %p154
      %p156 = scmp.ne.s32.totalorder %s144, %s145
      %p157 = scmp.eq.s32.totalorder %s20, 1
      %p158 = por %p156, %p157
      %p160 = scmp.ne.s32.totalorder %s145, %s159
      %p161 = scmp.eq.s32.totalorder %s20, 0
      %p162 = por %p160, %p161
      %s163 = ssub.s32 %s21, %s33
      %s164 = ssub.s32 %s22, %s29
      %s165 = sor.u32 %s163, %s164
      %p166 = scmp.eq.s32.totalorder %s165, 0
      %s168 = sadd.s32 %s167, 1
      %s169 = scalar_select %p166, %s167, %s168
      %p172 = pneg %p166
      %p173 = scmp.eq.s32.totalorder %s14, 1
      %p174 = por %p172, %p173
      %p175 = scmp.ne.s32.totalorder %s167, %s170
      %p176 = scmp.eq.s32.totalorder %s14, 0
      %p177 = por %p175, %p176
      %p178 = scmp.ne.s32.totalorder %s167, %s170
      %p179 = scmp.eq.s32.totalorder %s19, 1
      %p180 = por %p178, %p179
      %p181 = scmp.ne.s32.totalorder %s170, %s171
      %p182 = scmp.eq.s32.totalorder %s19, 0
      %p183 = por %p181, %p182
      %p184 = scmp.ne.s32.totalorder %s170, %s171
      %p185 = scmp.eq.s32.totalorder %s20, 1
      %p186 = por %p184, %p185
      %p188 = scmp.ne.s32.totalorder %s171, %s187
      %p189 = scmp.eq.s32.totalorder %s20, 0
      %p190 = por %p188, %p189
      %p191 = scmp.le.s32.totalorder 1, %s14
      %p192 = scmp.lt.s32.totalorder %s14, 3
      %p193 = pnand %p191, %p192
      %p194 = pneg %p193
      // Predicated region
      $region9: #{gnn_atomic_lg_final_forward.1} parent=5 // pred_check
        _
      $region10: #{gnn_atomic_lg_final_forward.1} parent=5 // pred_check_branch
        %196 = sbr.rel (%p193) target = $region12
      $region11: #{gnn_atomic_lg_final_forward.1} parent=5 // pred_region
        %s197 = ssub.s32 %s14, 1
        // Predicated region
        $region13: #{gnn_atomic_lg_final_forward.1} parent=11 // pred_check
          %p198 = pneg %p155
        $region14: #{gnn_atomic_lg_final_forward.1} parent=11 // pred_check_branch
          %200 = sbr.rel (%p198) target = $region16
        $region15: #{gnn_atomic_lg_final_forward.1} parent=11 // pred_region
          _
        $region16: #{gnn_atomic_lg_final_forward.1} parent=11 // pred_fallthru
          _
      $region12: #{gnn_atomic_lg_final_forward.1} parent=5 // pred_fallthru
        _
      %p201 = scmp.lt.s32.totalorder %s14, 2
      // Predicated region
      $region17: #{gnn_atomic_lg_final_forward.1} parent=5 // pred_check
        %p202 = pneg %p201
      $region18: #{gnn_atomic_lg_final_forward.1} parent=5 // pred_check_branch
        %204 = sbr.rel (%p202) target = $region20
      $region19: #{gnn_atomic_lg_final_forward.1} parent=5 // pred_region
        // Predicated region
        $region21: #{gnn_atomic_lg_final_forward.1} parent=19 // pred_check
          %p205 = pneg %p48
        $region22: #{gnn_atomic_lg_final_forward.1} parent=19 // pred_check_branch
          %207 = sbr.rel (%p205) target = $region24
        $region23: #{gnn_atomic_lg_final_forward.1} parent=19 // pred_region
          %s208 = smul.u32 2, %s22
          %p209 = scmp.lt.s32.totalorder %s21, 1
          %s210 = scalar_select %p209, %s21, 1
          %p211 = scmp.lt.s32.totalorder %s208, 1
          %s212 = scalar_select %p211, %s208, 1
          %s213 = smul.addr %s210, 2
          %s214 = sadd.s32 %s212, %s213
          %s215 = smul.addr %s214, 8
          %s216 = scalar_lea.vmem %s0, %s215
          %s217 = smul.u32 2, %s22
        $region24: #{gnn_atomic_lg_final_forward.1} parent=19 // pred_fallthru
          _
        // Predicated region
        $region25: #{gnn_atomic_lg_final_forward.1} parent=19 // pred_check
          %p218 = pneg %p74
        $region26: #{gnn_atomic_lg_final_forward.1} parent=19 // pred_check_branch
          %220 = sbr.rel (%p218) target = $region28
        $region27: #{gnn_atomic_lg_final_forward.1} parent=19 // pred_region
          %p221 = scmp.lt.s32.totalorder %s21, 1
          %s222 = scalar_select %p221, %s21, 1
          %s223 = smul.addr %s222, 8
          %s224 = scalar_lea.vmem %s1, %s223
        $region28: #{gnn_atomic_lg_final_forward.1} parent=19 // pred_fallthru
          _
        // Predicated region
        $region29: #{gnn_atomic_lg_final_forward.1} parent=19 // pred_check
          %p225 = pneg %p102
        $region30: #{gnn_atomic_lg_final_forward.1} parent=19 // pred_check_branch
          %227 = sbr.rel (%p225) target = $region32
        $region31: #{gnn_atomic_lg_final_forward.1} parent=19 // pred_region
          %s228 = smul.u32 2, %s22
          %p229 = scmp.lt.s32.totalorder %s21, 1
          %s230 = scalar_select %p229, %s21, 1
          %p231 = scmp.lt.s32.totalorder %s228, 1
          %s232 = scalar_select %p231, %s228, 1
          %s233 = smul.addr %s230, 2
          %s234 = sadd.s32 %s232, %s233
          %s235 = smul.addr %s234, 8
          %s236 = scalar_lea.vmem %s2, %s235
          %s237 = smul.u32 2, %s22
        $region32: #{gnn_atomic_lg_final_forward.1} parent=19 // pred_fallthru
          _
        // Predicated region
        $region33: #{gnn_atomic_lg_final_forward.1} parent=19 // pred_check
          %p238 = pneg %p128
        $region34: #{gnn_atomic_lg_final_forward.1} parent=19 // pred_check_branch
          %240 = sbr.rel (%p238) target = $region36
        $region35: #{gnn_atomic_lg_final_forward.1} parent=19 // pred_region
          %p241 = scmp.lt.s32.totalorder %s21, 1
          %s242 = scalar_select %p241, %s21, 1
          %s243 = smul.addr %s242, 8
          %s244 = scalar_lea.vmem %s3, %s243
        $region36: #{gnn_atomic_lg_final_forward.1} parent=19 // pred_fallthru
          _
      $region20: #{gnn_atomic_lg_final_forward.1} parent=5 // pred_fallthru
        _
      %p245 = scmp.le.s32.totalorder 1, %s14
      %p246 = scmp.lt.s32.totalorder %s14, 3
      %p247 = pnand %p245, %p246
      %p248 = pneg %p247
      // Predicated region
      $region37: #{gnn_atomic_lg_final_forward.1} parent=5 // pred_check
        _
      $region38: #{gnn_atomic_lg_final_forward.1} parent=5 // pred_check_branch
        %250 = sbr.rel (%p247) target = $region40
      $region39: #{gnn_atomic_lg_final_forward.1} parent=5 // pred_region
        %s251 = ssub.s32 %s14, 1
        %s252 = smul.u32 2, %s24
        %p253 = scmp.lt.s32.totalorder %s23, 1
        %s254 = scalar_select %p253, %s23, 1
        %p255 = scmp.lt.s32.totalorder %s252, 1
        %s256 = scalar_select %p255, %s252, 1
        %s257 = smul.addr %s254, 2
        %s258 = sadd.s32 %s256, %s257
        %s259 = smul.addr %s258, 8
        %s260 = scalar_lea.vmem %s0, %s259
        %p261 = pneg %p54
        %p262 = pneg %p51
        %p263 = scmp.lt.s32.totalorder %s23, 1
        %s264 = scalar_select %p263, %s23, 1
        %s265 = smul.addr %s264, 8
        %s266 = scalar_lea.vmem %s1, %s265
        %p267 = pneg %p80
        %p268 = pneg %p77
        %s269 = smul.u32 2, %s24
        %p270 = scmp.lt.s32.totalorder %s23, 1
        %s271 = scalar_select %p270, %s23, 1
        %p272 = scmp.lt.s32.totalorder %s269, 1
        %s273 = scalar_select %p272, %s269, 1
        %s274 = smul.addr %s271, 2
        %s275 = sadd.s32 %s273, %s274
        %s276 = smul.addr %s275, 8
        %s277 = scalar_lea.vmem %s2, %s276
        %p278 = pneg %p108
        %p279 = pneg %p105
        %p280 = scmp.lt.s32.totalorder %s23, 1
        %s281 = scalar_select %p280, %s23, 1
        %s282 = smul.addr %s281, 8
        %s283 = scalar_lea.vmem %s3, %s282
        %p284 = pneg %p134
        %p285 = pneg %p131
        %p286 = pneg %p155
        %p287 = pneg %p152
        %p288 = pneg %p183
        %p289 = pneg %p180
        %s290 = sand.u32 %s170, 1
        %s291 = scalar_lea.sflag [#allocation3], %s290
        %s292 = sand.u32 %s170, 1
        %s293 = smul.addr %s292, 8
        %s294 = scalar_lea.vmem [#allocation2], %s293
        %s295 = smul.u32 2, %s24
        %p296 = scmp.lt.s32.totalorder %s23, 1
        %s297 = scalar_select %p296, %s23, 1
        %p298 = scmp.lt.s32.totalorder %s295, 1
        %s299 = scalar_select %p298, %s295, 1
        %s300 = smul.addr %s297, 2
        %s301 = sadd.s32 %s299, %s300
        %s302 = smul.addr %s301, 8
        %s303 = scalar_lea.vmem %s0, %s302
        %s304 = smul.u32 2, %s24
        %p305 = scmp.lt.s32.totalorder %s23, 1
        %s306 = scalar_select %p305, %s23, 1
        %s307 = smul.addr %s306, 8
        %s308 = scalar_lea.vmem %s1, %s307
        %s309 = smul.u32 2, %s24
        %p310 = scmp.lt.s32.totalorder %s23, 1
        %s311 = scalar_select %p310, %s23, 1
        %p312 = scmp.lt.s32.totalorder %s309, 1
        %s313 = scalar_select %p312, %s309, 1
        %s314 = smul.addr %s311, 2
        %s315 = sadd.s32 %s313, %s314
        %s316 = smul.addr %s315, 8
        %s317 = scalar_lea.vmem %s2, %s316
        %s318 = smul.u32 2, %s24
        %p319 = scmp.lt.s32.totalorder %s23, 1
        %s320 = scalar_select %p319, %s23, 1
        %s321 = smul.addr %s320, 8
        %s322 = scalar_lea.vmem %s3, %s321
        %v323 = vld [vmem:[%s308] sm:$0xff]
        %v324 = vld [vmem:[%s303] sm:$0xff]
        %v325 = vld [vmem:[%s303 + $0x8] sm:$0xff]
        %v326 = vld [vmem:[%s322] sm:$0xff]
        %v327 = vld [vmem:[%s317] sm:$0xff]
        %v328 = vld [vmem:[%s317 + $0x8] sm:$0xff]
        %vm329 = vcmask 392192
        %v331 = vsel %vm329, %v326, 0
        %v334 = vsel %vm329, %v327, 0
        %v337 = vsel %vm329, %v328, 0
        %339 = vmatprep.subr.mxu0 0.0
        %340 = vmatpush1.xpose.msra.mxu0 %v334
        %341 = vmatprep.subr.mxu0 0.0
        %342 = vmatpush1.xpose.msra.mxu0 %v337
        %343 = vmatprep.subr.mxu0 0.0
        %344 = vmatpush1.xpose.msra.mxu0 0.0
        %345 = vmatprep.subr.mxu0 0.0
        %346 = vmatpush1.xpose.msra.mxu0 0.0
        %347 = vmatprep.subr.mxu0 0.0
        %348 = vmatpush1.xpose.msra.mxu0 0.0
        %349 = vmatprep.subr.mxu0 0.0
        %350 = vmatpush1.xpose.msra.mxu0 0.0
        %351 = vmatprep.subr.mxu0 0.0
        %352 = vmatpush1.xpose.msra.mxu0 0.0
        %353 = vmatprep.subr.mxu0 0.0
        %354 = vmatpush1.xpose.msra.mxu0 0.0
        %355 = vmatprep.subr.mxu0 0.0
        %356 = vmatpush1.xpose.msra.mxu0 0.0
        %357 = vmatprep.subr.mxu0 0.0
        %358 = vmatpush1.xpose.msra.mxu0 0.0
        %359 = vmatprep.subr.mxu0 0.0
        %360 = vmatpush1.xpose.msra.mxu0 0.0
        %361 = vmatprep.subr.mxu0 0.0
        %362 = vmatpush1.xpose.msra.mxu0 0.0
        %363 = vmatprep.subr.mxu0 0.0
        %364 = vmatpush1.xpose.msra.mxu0 0.0
        %365 = vmatprep.subr.mxu0 0.0
        %366 = vmatpush1.xpose.msra.mxu0 0.0
        %367 = vmatprep.subr.mxu0 0.0
        %368 = vmatpush1.xpose.msra.mxu0 0.0
        %369 = vmatprep.subr.mxu0 0.0
        %370 = vmatpush1.xpose.msra.mxu0 0.0
        %371 = vmatprep.subr.mxu0 0.0
        %372 = vmatpush1.xpose.msra.mxu0 0.0
        %373 = vmatprep.subr.mxu0 0.0
        %374 = vmatpush1.xpose.msra.mxu0 0.0
        %375 = vmatprep.subr.mxu0 0.0
        %376 = vmatpush1.xpose.msra.mxu0 0.0
        %377 = vmatprep.subr.mxu0 0.0
        %378 = vmatpush1.xpose.msra.mxu0 0.0
        %379 = vmatprep.subr.mxu0 0.0
        %380 = vmatpush1.xpose.msra.mxu0 0.0
        %381 = vmatprep.subr.mxu0 0.0
        %382 = vmatpush1.xpose.msra.mxu0 0.0
        %383 = vmatprep.subr.mxu0 0.0
        %384 = vmatpush1.xpose.msra.mxu0 0.0
        %385 = vmatprep.subr.mxu0 0.0
        %386 = vmatpush1.xpose.msra.mxu0 0.0
        %387 = vmatprep.subr.mxu0 0.0
        %388 = vmatpush1.xpose.msra.mxu0 0.0
        %389 = vmatprep.subr.mxu0 0.0
        %390 = vmatpush1.xpose.msra.mxu0 0.0
        %391 = vmatprep.subr.mxu0 0.0
        %392 = vmatpush1.xpose.msra.mxu0 0.0
        %393 = vmatprep.subr.mxu0 0.0
        %394 = vmatpush1.xpose.msra.mxu0 0.0
        %395 = vmatprep.subr.mxu0 0.0
        %396 = vmatpush1.xpose.msra.mxu0 0.0
        %397 = vmatprep.subr.mxu0 0.0
        %398 = vmatpush1.xpose.msra.mxu0 0.0
        %399 = vmatprep.subr.mxu0 0.0
        %400 = vmatpush1.xpose.msra.mxu0 0.0
        %401 = vmatprep.subr.mxu0 0.0
        %402 = vmatpush1.xpose.msra.mxu0 0.0
        %403 = vmatprep.mubr.f32.mxu0 0.0
        %404 = vmatmul.mubr.f32.gmra.mrb[0].mxu0 %v331
        %v405 = vpop.f32.mrb[0].mxu0
        %v406 = vadd.f32 0.0, %v405
        %v407 = vpop.f32.mrb[0].mxu0
        %408 = vdwg.mxu0
        %vm409 = vcmask 261120
        %v411 = vsel %vm409, %v323, 0
        %v414 = vsel %vm409, %v324, 0
        %v417 = vsel %vm409, %v325, 0
        %419 = vmatprep.subr.mxu0 0.0
        %420 = vmatpush1.xpose.msra.mxu0 %v414
        %421 = vmatprep.subr.mxu0 0.0
        %422 = vmatpush1.xpose.msra.mxu0 %v417
        %423 = vmatprep.subr.mxu0 0.0
        %424 = vmatpush1.xpose.msra.mxu0 0.0
        %425 = vmatprep.subr.mxu0 0.0
        %426 = vmatpush1.xpose.msra.mxu0 0.0
        %427 = vmatprep.subr.mxu0 0.0
        %428 = vmatpush1.xpose.msra.mxu0 0.0
        %429 = vmatprep.subr.mxu0 0.0
        %430 = vmatpush1.xpose.msra.mxu0 0.0
        %431 = vmatprep.subr.mxu0 0.0
        %432 = vmatpush1.xpose.msra.mxu0 0.0
        %433 = vmatprep.subr.mxu0 0.0
        %434 = vmatpush1.xpose.msra.mxu0 0.0
        %435 = vmatprep.subr.mxu0 0.0
        %436 = vmatpush1.xpose.msra.mxu0 0.0
        %437 = vmatprep.subr.mxu0 0.0
        %438 = vmatpush1.xpose.msra.mxu0 0.0
        %439 = vmatprep.subr.mxu0 0.0
        %440 = vmatpush1.xpose.msra.mxu0 0.0
        %441 = vmatprep.subr.mxu0 0.0
        %442 = vmatpush1.xpose.msra.mxu0 0.0
        %443 = vmatprep.subr.mxu0 0.0
        %444 = vmatpush1.xpose.msra.mxu0 0.0
        %445 = vmatprep.subr.mxu0 0.0
        %446 = vmatpush1.xpose.msra.mxu0 0.0
        %447 = vmatprep.subr.mxu0 0.0
        %448 = vmatpush1.xpose.msra.mxu0 0.0
        %449 = vmatprep.subr.mxu0 0.0
        %450 = vmatpush1.xpose.msra.mxu0 0.0
        %451 = vmatprep.subr.mxu0 0.0
        %452 = vmatpush1.xpose.msra.mxu0 0.0
        %453 = vmatprep.subr.mxu0 0.0
        %454 = vmatpush1.xpose.msra.mxu0 0.0
        %455 = vmatprep.subr.mxu0 0.0
        %456 = vmatpush1.xpose.msra.mxu0 0.0
        %457 = vmatprep.subr.mxu0 0.0
        %458 = vmatpush1.xpose.msra.mxu0 0.0
        %459 = vmatprep.subr.mxu0 0.0
        %460 = vmatpush1.xpose.msra.mxu0 0.0
        %461 = vmatprep.subr.mxu0 0.0
        %462 = vmatpush1.xpose.msra.mxu0 0.0
        %463 = vmatprep.subr.mxu0 0.0
        %464 = vmatpush1.xpose.msra.mxu0 0.0
        %465 = vmatprep.subr.mxu0 0.0
        %466 = vmatpush1.xpose.msra.mxu0 0.0
        %467 = vmatprep.subr.mxu0 0.0
        %468 = vmatpush1.xpose.msra.mxu0 0.0
        %469 = vmatprep.subr.mxu0 0.0
        %470 = vmatpush1.xpose.msra.mxu0 0.0
        %471 = vmatprep.subr.mxu0 0.0
        %472 = vmatpush1.xpose.msra.mxu0 0.0
        %473 = vmatprep.subr.mxu0 0.0
        %474 = vmatpush1.xpose.msra.mxu0 0.0
        %475 = vmatprep.subr.mxu0 0.0
        %476 = vmatpush1.xpose.msra.mxu0 0.0
        %477 = vmatprep.subr.mxu0 0.0
        %478 = vmatpush1.xpose.msra.mxu0 0.0
        %479 = vmatprep.subr.mxu0 0.0
        %480 = vmatpush1.xpose.msra.mxu0 0.0
        %481 = vmatprep.subr.mxu0 0.0
        %482 = vmatpush1.xpose.msra.mxu0 0.0
        %483 = vmatprep.mubr.f32.mxu0 0.0
        %484 = vmatmul.mubr.f32.gmra.mrb[0].mxu0 %v411
        %v485 = vpop.f32.mrb[0].mxu0
        %v486 = vadd.f32 %v406, %v485
        %v487 = vpop.f32.mrb[0].mxu0
        %488 = vdwg.mxu0
        %v489 = vld [vmem:[%s4] sm:$0xff]
        %491 = vset.pattern.permute.xlu0 0
        %492 = vperm.xlu0 %491, %v489
        %v493 = vpop.permute.xlu0 %492
        %v495 = vadd.f32 %v486, %v493
        %vm496 = vcmask 130048
        %497 = vst.msk [vmem:[%s294] sm:$0xff] %vm496, %v495
        %s498 = sand.u32 %s170, 1
        %s499 = scalar_lea.sflag [#allocation3], %s498
        %s500 = sand.u32 %s170, 1
        %s501 = smul.addr %s500, 8
        %s502 = scalar_lea.vmem [#allocation2], %s501
        // Predicated region
        $region41: #{gnn_atomic_lg_final_forward.1} parent=39 // pred_check
          %p503 = pneg %p180
        $region42: #{gnn_atomic_lg_final_forward.1} parent=39 // pred_check_branch
          %505 = sbr.rel (%p503) target = $region44
        $region43: #{gnn_atomic_lg_final_forward.1} parent=39 // pred_region
          %s507 = ssub.s32 128, 128
          %508 = vsyncadd %s499, %s507
          %s509 = sadd.s32 %s24, %s23
          %s510 = smul.addr %s509, 128
          %s511 = scalar_lea.hbm %s5, %s510
          %s513 = sshll.u32 %s502, 4
          %s514 = int_to_ptr.vmem [resolvable:$true] %s513
          %516 = dma.vmem_to_hbm [thread:$0]  %s514, 128, %s511, %s499
        $region44: #{gnn_atomic_lg_final_forward.1} parent=39 // pred_fallthru
          _
      $region40: #{gnn_atomic_lg_final_forward.1} parent=5 // pred_fallthru
        _
      %p517 = scmp.le.s32.totalorder 2, %s14
      // Predicated region
      $region45: #{gnn_atomic_lg_final_forward.1} parent=5 // pred_check
        %p518 = pneg %p517
      $region46: #{gnn_atomic_lg_final_forward.1} parent=5 // pred_check_branch
        %520 = sbr.rel (%p518) target = $region48
      $region47: #{gnn_atomic_lg_final_forward.1} parent=5 // pred_region
        %s521 = ssub.s32 %s14, 2
        // Predicated region
        $region49: #{gnn_atomic_lg_final_forward.1} parent=47 // pred_check
          %p522 = pneg %p186
        $region50: #{gnn_atomic_lg_final_forward.1} parent=47 // pred_check_branch
          %524 = sbr.rel (%p522) target = $region52
        $region51: #{gnn_atomic_lg_final_forward.1} parent=47 // pred_region
          %s525 = sand.u32 %s171, 1
          %s526 = scalar_lea.sflag [#allocation3], %s525
          %s527 = sand.u32 %s171, 1
          %s528 = smul.addr %s527, 8
          %s529 = scalar_lea.vmem [#allocation2], %s528
          %530 = dma.done %s526, 128
        $region52: #{gnn_atomic_lg_final_forward.1} parent=47 // pred_fallthru
          _
      $region48: #{gnn_atomic_lg_final_forward.1} parent=5 // pred_fallthru
        _
    $region6: #{gnn_atomic_lg_final_forward.1} parent=1 // loop_footer
      %s18 = sadd.s32 1, %s14
    $region7: #{gnn_atomic_lg_final_forward.1} parent=1 // loop_footer_branch
      %13 = sbr.rel target = $region3
    $region8: #{gnn_atomic_lg_final_forward.1} parent=1 // loop_exit
      _
    %531 = vsyncpa [#allocation3], 1
    %s532 = scalar_lea.sflag [#allocation3], 1
    %533 = vsyncpa %s532, 1

</llo_original>
